<compile_context>
chip_gen: v6e
topology: v6e:2x2x1
jax: 0.10.0
libtpu: 0.0.40
codegen_flags: <defaults>
</compile_context>

<pallas_src>
import jax
import jax.numpy as jnp
from jax.experimental import pallas as pl
from jax.experimental.pallas import tpu as pltpu


# ----------------------------- model config ---------------------------------
BATCH = 2
CHANNELS = 4
IMG = 16
PATCH = 8
NUM_PATCHES = (IMG // PATCH) * (IMG // PATCH)          # 4
PATCH_DIM = CHANNELS * PATCH * PATCH                   # 256
HIDDEN = 32
HID_PAD = 128                                          # lane-dense hidden width
NUM_CLASSES = 10
OUT_PAD = 128                                          # lane-dense logits width


def _gelu_tanh(x):
    # tanh-approximation GELU (EUP-friendly).
    c = 0.7978845608028654  # sqrt(2/pi)
    return 0.5 * x * (1.0 + jnp.tanh(c * (x + 0.044715 * x * x * x)))


def _gelu_dtype():
    """bf16 GELU only where the VPU/EUP are bf16-capable (v6e/v7x)."""
    kind = jax.devices()[0].device_kind.lower()
    if any(t in kind for t in ("v2", "v3", "v4", "v5")):
        return jnp.float32
    return jnp.bfloat16


# ------------------------------ Pallas kernel --------------------------------
def _make_kernel(gelu_dtype):
    """One batch tile.

    xp_ref   : [NUM_PATCHES, tile_imgs, PATCH_DIM]  bf16  patch-major patches
    w1_ref   : [PATCH_DIM, HID_PAD]                 bf16  patch-embed weight (padded)
    bias_ref : [8, HID_PAD]                         f32   row0=b1 (padded), row1=b2 (padded)
    w2_ref   : [HID_PAD, OUT_PAD]                   bf16  head weight (padded rows+cols)
    out_ref  : [tile_imgs, OUT_PAD]                 f32   padded logits (lane-dense)
    """
    def kernel(xp_ref, w1_ref, bias_ref, w2_ref, out_ref):
        w1 = w1_ref[...]                        # (PATCH_DIM, HID_PAD) bf16
        b1 = bias_ref[0:1, :]                   # (1, HID_PAD) f32
        b2 = bias_ref[1:2, :]                   # (1, OUT_PAD) f32

        # Patch embedding + GELU; mean-pool over patches via slab accumulation
        # (patch-major layout -> no concat / strided reductions, pure VPU adds).
        tile_imgs = out_ref.shape[0]
        pooled = jnp.zeros((tile_imgs, HID_PAD), jnp.float32)
        for p in range(NUM_PATCHES):            # static, NUM_PATCHES == 4
            h = jnp.dot(xp_ref[p], w1, preferred_element_type=jnp.float32)
            g = _gelu_tanh((h + b1).astype(gelu_dtype))
            pooled = pooled + g.astype(jnp.float32)
        pooled = pooled * (1.0 / NUM_PATCHES)

        # Classification head on the MXU (bf16 operands, f32 accumulate),
        # full 128-lane result -> unmasked stores.
        logits = jnp.dot(pooled.astype(jnp.bfloat16), w2_ref[...],
                         preferred_element_type=jnp.float32)
        out_ref[...] = (logits + b2).astype(out_ref.dtype)

    return kernel


def _choose_tiling(batch):
    """Return (padded_batch, tile_imgs).

    * tiles capped at ~2048 xp rows (tile_imgs * NUM_PATCHES): ~1 MiB bf16 per
      buffer, trivially within v7x's 64 MiB VMEM even double-buffered.
    * tile_imgs is a multiple of 8 (sublane-aligned blocks); awkward batches
      are zero-padded instead of falling back to a whole-batch block.
    * prefer >= 2 tiles when possible so the "parallel" grid axis can be split
      across v7x's two TensorCores (no-op on v5e/v6e).
    """
    if batch <= 8:
        return batch, batch                      # one tiny tile (full-dim block)
    max_tile = max(8, 2048 // NUM_PATCHES)       # 512 images -> 2048 xp rows
    padded = -(-batch // 8) * 8
    tile = min(max_tile, -(-padded // 2))        # aim for >= 2 tiles
    tile = -(-tile // 8) * 8
    padded = -(-padded // tile) * tile
    return padded, tile


def stage_params(w1, b1, w2, b2):
    """One-time parameter staging (hoisted out of the per-call path):
    bf16 MXU operands, hidden/class dims zero-padded to 128 lanes, both biases
    packed into a single lane-dense (8,128) f32 block (one small DMA)."""
    w1p = jnp.zeros((PATCH_DIM, HID_PAD), jnp.bfloat16)
    w1p = w1p.at[:, :HIDDEN].set(w1.astype(jnp.bfloat16))
    w2p = jnp.zeros((HID_PAD, OUT_PAD), jnp.bfloat16)
    w2p = w2p.at[:HIDDEN, :NUM_CLASSES].set(w2.astype(jnp.bfloat16))
    bias = jnp.zeros((8, HID_PAD), jnp.float32)
    bias = bias.at[0, :HIDDEN].set(b1.astype(jnp.float32))
    bias = bias.at[1, :NUM_CLASSES].set(b2.astype(jnp.float32))
    return w1p, bias, w2p


@jax.jit
def classifier_logits_pallas(x_nchw, w1p, bias, w2p):
    """Runs the synthetic HF-style classifier; returns logits [B, NUM_CLASSES]."""
    B, C, H, W = x_nchw.shape
    gh, gw = H // PATCH, W // PATCH

    # ---- patchify NCHW -> patch-major [NUM_PATCHES, B, PATCH_DIM] in bf16 ---
    # TODO(synk): move this space-to-depth fully in-kernel; for now it stays in
    # XLA and allow_input_fusion lets it fuse into the pallas_call operand.
    xp = x_nchw.astype(jnp.bfloat16).reshape(B, C, gh, PATCH, gw, PATCH)
    xp = xp.transpose(2, 4, 0, 1, 3, 5).reshape(gh * gw, B, C * PATCH * PATCH)

    padded_b, tile_imgs = _choose_tiling(B)
    if padded_b != B:
        xp = jnp.pad(xp, ((0, 0), (0, padded_b - B), (0, 0)))
    n_tiles = padded_b // tile_imgs

    out = pl.pallas_call(
        _make_kernel(_gelu_dtype()),
        out_shape=jax.ShapeDtypeStruct((padded_b, OUT_PAD), jnp.float32),
        grid=(n_tiles,),
        in_specs=[
            # NOTE: w1p/bias/w2p have constant index_maps; pl.Buffered(1) would
            # shave a duplicated buffer each — skipped as negligible here.
            pl.BlockSpec((NUM_PATCHES, tile_imgs, PATCH_DIM),
                         lambda i: (0, i, 0)),
            pl.BlockSpec((PATCH_DIM, HID_PAD), lambda i: (0, 0)),
            pl.BlockSpec((8, HID_PAD), lambda i: (0, 0)),
            pl.BlockSpec((HID_PAD, OUT_PAD), lambda i: (0, 0)),
        ],
        out_specs=pl.BlockSpec((tile_imgs, OUT_PAD), lambda i: (i, 0)),
        compiler_params=pltpu.CompilerParams(
            dimension_semantics=("parallel",),
            allow_input_fusion=[True, False, False, False]),
    )(xp, w1p, bias, w2p)

    return out[:B, :NUM_CLASSES]


# ------------------------------ reference ------------------------------------
def classifier_logits_ref(x_nchw, w1, b1, w2, b2):
    B, C, H, W = x_nchw.shape
    gh, gw = H // PATCH, W // PATCH
    xp = x_nchw.astype(jnp.float32).reshape(B, C, gh, PATCH, gw, PATCH)
    xp = xp.transpose(0, 2, 4, 1, 3, 5).reshape(B * gh * gw, C * PATCH * PATCH)
    h = _gelu_tanh(xp @ w1 + b1[None, :])
    pooled = h.reshape(B, gh * gw, HIDDEN).mean(axis=1)
    return pooled @ w2 + b2[None, :]


# -------------------------------- main ---------------------------------------
if __name__ == "__main__":
    key = jax.random.PRNGKey(0)
    kx, k1, k2, k3, k4 = jax.random.split(key, 5)

    # Deterministic synthetic "pretrained" parameters.
    x = jax.random.normal(kx, (BATCH, CHANNELS, IMG, IMG), dtype=jnp.float32)
    w1 = jax.random.normal(k1, (PATCH_DIM, HIDDEN), dtype=jnp.float32) * 0.02
    b1 = jax.random.normal(k2, (HIDDEN,), dtype=jnp.float32) * 0.01
    w2 = jax.random.normal(k3, (HIDDEN, NUM_CLASSES), dtype=jnp.float32) * 0.02
    b2 = jax.random.normal(k4, (NUM_CLASSES,), dtype=jnp.float32) * 0.01

    # Stage parameters once (bf16 cast / padding / bias packing), reuse per call.
    w1p, bias, w2p = stage_params(w1, b1, w2, b2)
    w1p, bias, w2p = jax.block_until_ready((w1p, bias, w2p))

    logits = classifier_logits_pallas(x, w1p, bias, w2p)
    logits = jax.block_until_ready(logits)

    ref = classifier_logits_ref(x, w1, b1, w2, b2)
    assert logits.shape == (BATCH, NUM_CLASSES), logits.shape
    # bf16 matmul operands (and bf16 GELU on v6e/v7x) -> loosened tolerance
    # vs. the pure-f32 reference.
    assert jnp.allclose(logits, ref, atol=2e-2, rtol=2e-2), (
        "mismatch vs reference")

    print("KERNEL_OK")
</pallas_src>

<mosaic_0001>
module attributes {stable_mosaic.version = 11 : i64} {
  func.func @kernel(%arg0: i32, %arg1: memref<4x2x256xbf16, #tpu.memory_space<vmem>>, %arg2: memref<256x128xbf16, #tpu.memory_space<vmem>>, %arg3: memref<8x128xf32, #tpu.memory_space<vmem>>, %arg4: memref<128x128xbf16, #tpu.memory_space<vmem>>, %arg5: memref<2x128xf32, #tpu.memory_space<vmem>>) attributes {dimension_semantics = [#tpu.dimension_semantics<parallel>], iteration_bounds = array<i64: 1>, scalar_prefetch = 0 : i64, scratch_operands = 0 : i64, tpu.core_type = #tpu.core_type<tc>, window_params = [{transform_indices = @transform_0, window_bounds = array<i64: 4, 2, 256>}, {pipeline_mode = #tpu.pipeline_mode<synchronous>, transform_indices = @transform_1, window_bounds = array<i64: 256, 128>}, {pipeline_mode = #tpu.pipeline_mode<synchronous>, transform_indices = @transform_2, window_bounds = array<i64: 8, 128>}, {pipeline_mode = #tpu.pipeline_mode<synchronous>, transform_indices = @transform_3, window_bounds = array<i64: 128, 128>}, {transform_indices = @transform_4, window_bounds = array<i64: 2, 128>}]} {
    %c0 = arith.constant 0 : index
    %c0_0 = arith.constant 0 : index
    %0 = vector.load %arg2[%c0, %c0_0] : memref<256x128xbf16, #tpu.memory_space<vmem>>, vector<256x128xbf16>
    %c0_1 = arith.constant 0 : index
    %c0_2 = arith.constant 0 : index
    %1 = vector.load %arg3[%c0_1, %c0_2] : memref<8x128xf32, #tpu.memory_space<vmem>>, vector<1x128xf32>
    %c1 = arith.constant 1 : index
    %c0_3 = arith.constant 0 : index
    %2 = vector.load %arg3[%c1, %c0_3] : memref<8x128xf32, #tpu.memory_space<vmem>>, vector<1x128xf32>
    %cst = arith.constant 0.000000e+00 : f32
    %3 = vector.broadcast %cst : f32 to vector<2x128xf32>
    %c0_4 = arith.constant 0 : index
    %c0_5 = arith.constant 0 : index
    %c0_6 = arith.constant 0 : index
    %4 = vector.load %arg1[%c0_4, %c0_5, %c0_6] : memref<4x2x256xbf16, #tpu.memory_space<vmem>>, vector<1x2x256xbf16>
    %5 = vector.shape_cast %4 : vector<1x2x256xbf16> to vector<2x256xbf16>
    %cst_7 = arith.constant dense<0.000000e+00> : vector<2x128xf32>
    %6 = tpu.matmul %5, %0, %cst_7 {dimension_numbers = #tpu.dot_dimension_numbers<[1], [0], [0], [1], [0, 0, 1, 1], [], []>} : vector<2x256xbf16>, vector<256x128xbf16>, vector<2x128xf32> -> vector<2x128xf32>
    %7 = vector.broadcast %1 : vector<1x128xf32> to vector<2x128xf32>
    %8 = arith.addf %6, %7 : vector<2x128xf32>
    %9 = arith.truncf %8 : vector<2x128xf32> to vector<2x128xbf16>
    %cst_8 = arith.constant 5.000000e-01 : bf16
    %10 = vector.broadcast %cst_8 : bf16 to vector<2x128xbf16>
    %11 = arith.mulf %10, %9 : vector<2x128xbf16>
    %cst_9 = arith.constant 4.467770e-02 : bf16
    %12 = vector.broadcast %cst_9 : bf16 to vector<2x128xbf16>
    %13 = arith.mulf %12, %9 : vector<2x128xbf16>
    %14 = arith.mulf %13, %9 : vector<2x128xbf16>
    %15 = arith.mulf %14, %9 : vector<2x128xbf16>
    %16 = arith.addf %9, %15 : vector<2x128xbf16>
    %cst_10 = arith.constant 7.968750e-01 : bf16
    %17 = vector.broadcast %cst_10 : bf16 to vector<2x128xbf16>
    %18 = arith.mulf %17, %16 : vector<2x128xbf16>
    %19 = math.tanh %18 : vector<2x128xbf16>
    %cst_11 = arith.constant 1.000000e+00 : bf16
    %20 = vector.broadcast %cst_11 : bf16 to vector<2x128xbf16>
    %21 = arith.addf %20, %19 : vector<2x128xbf16>
    %22 = arith.mulf %11, %21 : vector<2x128xbf16>
    %23 = arith.extf %22 : vector<2x128xbf16> to vector<2x128xf32>
    %24 = arith.addf %3, %23 : vector<2x128xf32>
    %c1_12 = arith.constant 1 : index
    %c0_13 = arith.constant 0 : index
    %c0_14 = arith.constant 0 : index
    %25 = vector.load %arg1[%c1_12, %c0_13, %c0_14] : memref<4x2x256xbf16, #tpu.memory_space<vmem>>, vector<1x2x256xbf16>
    %26 = vector.shape_cast %25 : vector<1x2x256xbf16> to vector<2x256xbf16>
    %cst_15 = arith.constant dense<0.000000e+00> : vector<2x128xf32>
    %27 = tpu.matmul %26, %0, %cst_15 {dimension_numbers = #tpu.dot_dimension_numbers<[1], [0], [0], [1], [0, 0, 1, 1], [], []>} : vector<2x256xbf16>, vector<256x128xbf16>, vector<2x128xf32> -> vector<2x128xf32>
    %28 = vector.broadcast %1 : vector<1x128xf32> to vector<2x128xf32>
    %29 = arith.addf %27, %28 : vector<2x128xf32>
    %30 = arith.truncf %29 : vector<2x128xf32> to vector<2x128xbf16>
    %cst_16 = arith.constant 5.000000e-01 : bf16
    %31 = vector.broadcast %cst_16 : bf16 to vector<2x128xbf16>
    %32 = arith.mulf %31, %30 : vector<2x128xbf16>
    %cst_17 = arith.constant 4.467770e-02 : bf16
    %33 = vector.broadcast %cst_17 : bf16 to vector<2x128xbf16>
    %34 = arith.mulf %33, %30 : vector<2x128xbf16>
    %35 = arith.mulf %34, %30 : vector<2x128xbf16>
    %36 = arith.mulf %35, %30 : vector<2x128xbf16>
    %37 = arith.addf %30, %36 : vector<2x128xbf16>
    %cst_18 = arith.constant 7.968750e-01 : bf16
    %38 = vector.broadcast %cst_18 : bf16 to vector<2x128xbf16>
    %39 = arith.mulf %38, %37 : vector<2x128xbf16>
    %40 = math.tanh %39 : vector<2x128xbf16>
    %cst_19 = arith.constant 1.000000e+00 : bf16
    %41 = vector.broadcast %cst_19 : bf16 to vector<2x128xbf16>
    %42 = arith.addf %41, %40 : vector<2x128xbf16>
    %43 = arith.mulf %32, %42 : vector<2x128xbf16>
    %44 = arith.extf %43 : vector<2x128xbf16> to vector<2x128xf32>
    %45 = arith.addf %24, %44 : vector<2x128xf32>
    %c2 = arith.constant 2 : index
    %c0_20 = arith.constant 0 : index
    %c0_21 = arith.constant 0 : index
    %46 = vector.load %arg1[%c2, %c0_20, %c0_21] : memref<4x2x256xbf16, #tpu.memory_space<vmem>>, vector<1x2x256xbf16>
    %47 = vector.shape_cast %46 : vector<1x2x256xbf16> to vector<2x256xbf16>
    %cst_22 = arith.constant dense<0.000000e+00> : vector<2x128xf32>
    %48 = tpu.matmul %47, %0, %cst_22 {dimension_numbers = #tpu.dot_dimension_numbers<[1], [0], [0], [1], [0, 0, 1, 1], [], []>} : vector<2x256xbf16>, vector<256x128xbf16>, vector<2x128xf32> -> vector<2x128xf32>
    %49 = vector.broadcast %1 : vector<1x128xf32> to vector<2x128xf32>
    %50 = arith.addf %48, %49 : vector<2x128xf32>
    %51 = arith.truncf %50 : vector<2x128xf32> to vector<2x128xbf16>
    %cst_23 = arith.constant 5.000000e-01 : bf16
    %52 = vector.broadcast %cst_23 : bf16 to vector<2x128xbf16>
    %53 = arith.mulf %52, %51 : vector<2x128xbf16>
    %cst_24 = arith.constant 4.467770e-02 : bf16
    %54 = vector.broadcast %cst_24 : bf16 to vector<2x128xbf16>
    %55 = arith.mulf %54, %51 : vector<2x128xbf16>
    %56 = arith.mulf %55, %51 : vector<2x128xbf16>
    %57 = arith.mulf %56, %51 : vector<2x128xbf16>
    %58 = arith.addf %51, %57 : vector<2x128xbf16>
    %cst_25 = arith.constant 7.968750e-01 : bf16
    %59 = vector.broadcast %cst_25 : bf16 to vector<2x128xbf16>
    %60 = arith.mulf %59, %58 : vector<2x128xbf16>
    %61 = math.tanh %60 : vector<2x128xbf16>
    %cst_26 = arith.constant 1.000000e+00 : bf16
    %62 = vector.broadcast %cst_26 : bf16 to vector<2x128xbf16>
    %63 = arith.addf %62, %61 : vector<2x128xbf16>
    %64 = arith.mulf %53, %63 : vector<2x128xbf16>
    %65 = arith.extf %64 : vector<2x128xbf16> to vector<2x128xf32>
    %66 = arith.addf %45, %65 : vector<2x128xf32>
    %c3 = arith.constant 3 : index
    %c0_27 = arith.constant 0 : index
    %c0_28 = arith.constant 0 : index
    %67 = vector.load %arg1[%c3, %c0_27, %c0_28] : memref<4x2x256xbf16, #tpu.memory_space<vmem>>, vector<1x2x256xbf16>
    %68 = vector.shape_cast %67 : vector<1x2x256xbf16> to vector<2x256xbf16>
    %cst_29 = arith.constant dense<0.000000e+00> : vector<2x128xf32>
    %69 = tpu.matmul %68, %0, %cst_29 {dimension_numbers = #tpu.dot_dimension_numbers<[1], [0], [0], [1], [0, 0, 1, 1], [], []>} : vector<2x256xbf16>, vector<256x128xbf16>, vector<2x128xf32> -> vector<2x128xf32>
    %70 = vector.broadcast %1 : vector<1x128xf32> to vector<2x128xf32>
    %71 = arith.addf %69, %70 : vector<2x128xf32>
    %72 = arith.truncf %71 : vector<2x128xf32> to vector<2x128xbf16>
    %cst_30 = arith.constant 5.000000e-01 : bf16
    %73 = vector.broadcast %cst_30 : bf16 to vector<2x128xbf16>
    %74 = arith.mulf %73, %72 : vector<2x128xbf16>
    %cst_31 = arith.constant 4.467770e-02 : bf16
    %75 = vector.broadcast %cst_31 : bf16 to vector<2x128xbf16>
    %76 = arith.mulf %75, %72 : vector<2x128xbf16>
    %77 = arith.mulf %76, %72 : vector<2x128xbf16>
    %78 = arith.mulf %77, %72 : vector<2x128xbf16>
    %79 = arith.addf %72, %78 : vector<2x128xbf16>
    %cst_32 = arith.constant 7.968750e-01 : bf16
    %80 = vector.broadcast %cst_32 : bf16 to vector<2x128xbf16>
    %81 = arith.mulf %80, %79 : vector<2x128xbf16>
    %82 = math.tanh %81 : vector<2x128xbf16>
    %cst_33 = arith.constant 1.000000e+00 : bf16
    %83 = vector.broadcast %cst_33 : bf16 to vector<2x128xbf16>
    %84 = arith.addf %83, %82 : vector<2x128xbf16>
    %85 = arith.mulf %74, %84 : vector<2x128xbf16>
    %86 = arith.extf %85 : vector<2x128xbf16> to vector<2x128xf32>
    %87 = arith.addf %66, %86 : vector<2x128xf32>
    %cst_34 = arith.constant 2.500000e-01 : f32
    %88 = vector.broadcast %cst_34 : f32 to vector<2x128xf32>
    %89 = arith.mulf %87, %88 : vector<2x128xf32>
    %90 = arith.truncf %89 : vector<2x128xf32> to vector<2x128xbf16>
    %c0_35 = arith.constant 0 : index
    %c0_36 = arith.constant 0 : index
    %91 = vector.load %arg4[%c0_35, %c0_36] : memref<128x128xbf16, #tpu.memory_space<vmem>>, vector<128x128xbf16>
    %cst_37 = arith.constant dense<0.000000e+00> : vector<2x128xf32>
    %92 = tpu.matmul %90, %91, %cst_37 {dimension_numbers = #tpu.dot_dimension_numbers<[1], [0], [0], [1], [0, 0, 1, 1], [], []>} : vector<2x128xbf16>, vector<128x128xbf16>, vector<2x128xf32> -> vector<2x128xf32>
    %93 = vector.broadcast %2 : vector<1x128xf32> to vector<2x128xf32>
    %94 = arith.addf %92, %93 : vector<2x128xf32>
    %c0_38 = arith.constant 0 : index
    %c0_39 = arith.constant 0 : index
    %95 = vector.load %arg5[%c0_38, %c0_39] : memref<2x128xf32, #tpu.memory_space<vmem>>, vector<2x128xf32>
    tpu.vector_store %arg5[%c0_38, %c0_39], %94 {strides = array<i32>} : memref<2x128xf32, #tpu.memory_space<vmem>>, vector<2x128xf32>,
    return
  }
  func.func @transform_0(%arg0: i32) -> (i32, i32, i32) {
    %c0_i32 = arith.constant 0 : i32
    %c0_i32_0 = arith.constant 0 : i32
    %c0_i32_1 = arith.constant 0 : i32
    return %c0_i32, %arg0, %c0_i32_0 : i32, i32, i32
  }
  func.func @transform_1(%arg0: i32) -> (i32, i32) {
    %c0_i32 = arith.constant 0 : i32
    %c0_i32_0 = arith.constant 0 : i32
    %c0_i32_1 = arith.constant 0 : i32
    return %c0_i32, %c0_i32_0 : i32, i32
  }
  func.func @transform_2(%arg0: i32) -> (i32, i32) {
    %c0_i32 = arith.constant 0 : i32
    %c0_i32_0 = arith.constant 0 : i32
    %c0_i32_1 = arith.constant 0 : i32
    return %c0_i32, %c0_i32_0 : i32, i32
  }
  func.func @transform_3(%arg0: i32) -> (i32, i32) {
    %c0_i32 = arith.constant 0 : i32
    %c0_i32_0 = arith.constant 0 : i32
    %c0_i32_1 = arith.constant 0 : i32
    return %c0_i32, %c0_i32_0 : i32, i32
  }
  func.func @transform_4(%arg0: i32) -> (i32, i32) {
    %c0_i32 = arith.constant 0 : i32
    %c0_i32_0 = arith.constant 0 : i32
    return %arg0, %c0_i32 : i32, i32
  }
}

</mosaic_0001>

<llo_original>
// kernel: classifier_logits_pallas.1
$region0: #{classifier_logits_pallas.1}
  #allocation0 [shape = 'u32[]', space=smem, size = 0x4, offset = 0x4, fixed_abs, tag = 'smem constant byte address 0x4 - core index']
  #allocation1 [shape = 'u32[144,128]{1,0:T(1,128)}', space=vmem, size = 0x12000, scoped, tag = 'internal scratch']
  %s0 = inlined_call_operand.vmem [shape: bf16[4,2,256], index: 0, kind: input, shape index: {}]
  %s1 = inlined_call_operand.vmem [shape: bf16[256,128], index: 1, kind: input, shape index: {}]
  %s2 = inlined_call_operand.vmem [shape: f32[8,128], index: 2, kind: input, shape index: {}]
  %s3 = inlined_call_operand.vmem [shape: bf16[128,128], index: 3, kind: input, shape index: {}]
  %s4 = inlined_call_operand.hbm [shape: f32[2,128], index: 4, kind: output, shape index: {}]
  %s5 = sld [smem:[#allocation0]]
  $region26: #{classifier_logits_pallas.1} parent=0
    _
  %s7 = ssub.s32 1, %s5
  %s8 = scalar_select 0, %s7, %s5
  $region1: #{classifier_logits_pallas.1} parent=0
    #allocation2 [shape = 'u8[1024]{0}', space=vmem, size = 0x400, scoped, tag = 'output window, operand 0, single buffered']
    #allocation3 [shape = 's32[1]{0}', space=sflag, size = 0x4, scoped, tag = 'scoped memory for classifier_logits_pallas.1']
    %9 = vsyncpa [#allocation3], 0
    // Predicated region
    $region2: #{classifier_logits_pallas.1} parent=1 // pred_check
      _
    $region3: #{classifier_logits_pallas.1} parent=1 // pred_check_branch
      %11 = sbr.rel (0) target = $region5
    $region4: #{classifier_logits_pallas.1} parent=1 // pred_region
      _
    $region5: #{classifier_logits_pallas.1} parent=1 // pred_fallthru
      _
    // Predicated region
    $region6: #{classifier_logits_pallas.1} parent=1 // pred_check
      _
    $region7: #{classifier_logits_pallas.1} parent=1 // pred_check_branch
      %13 = sbr.rel (0) target = $region9
    $region8: #{classifier_logits_pallas.1} parent=1 // pred_region
      _
    $region9: #{classifier_logits_pallas.1} parent=1 // pred_fallthru
      _
    // Predicated region
    $region10: #{classifier_logits_pallas.1} parent=1 // pred_check
      _
    $region11: #{classifier_logits_pallas.1} parent=1 // pred_check_branch
      %15 = sbr.rel (0) target = $region13
    $region12: #{classifier_logits_pallas.1} parent=1 // pred_region
      _
    $region13: #{classifier_logits_pallas.1} parent=1 // pred_fallthru
      _
    // Predicated region
    $region14: #{classifier_logits_pallas.1} parent=1 // pred_check
      _
    $region15: #{classifier_logits_pallas.1} parent=1 // pred_check_branch
      %17 = sbr.rel (0) target = $region17
    $region16: #{classifier_logits_pallas.1} parent=1 // pred_region
      _
    $region17: #{classifier_logits_pallas.1} parent=1 // pred_fallthru
      _
    %v23 = vld [vmem:[%s1] sm:$0xf]
    %v24 = vld [vmem:[%s1 + $0x4] sm:$0xf]
    %v25 = vld [vmem:[%s1 + $0x8] sm:$0xf]
    %v26 = vld [vmem:[%s1 + $0xc] sm:$0xf]
    %v27 = vld [vmem:[%s1 + $0x10] sm:$0xf]
    %v28 = vld [vmem:[%s1 + $0x14] sm:$0xf]
    %v29 = vld [vmem:[%s1 + $0x18] sm:$0xf]
    %v30 = vld [vmem:[%s1 + $0x1c] sm:$0xf]
    %v31 = vld [vmem:[%s1 + $0x20] sm:$0xf]
    %v32 = vld [vmem:[%s1 + $0x24] sm:$0xf]
    %v33 = vld [vmem:[%s1 + $0x28] sm:$0xf]
    %v34 = vld [vmem:[%s1 + $0x2c] sm:$0xf]
    %v35 = vld [vmem:[%s1 + $0x30] sm:$0xf]
    %v36 = vld [vmem:[%s1 + $0x34] sm:$0xf]
    %v37 = vld [vmem:[%s1 + $0x38] sm:$0xf]
    %v38 = vld [vmem:[%s1 + $0x3c] sm:$0xf]
    %v39 = vld [vmem:[%s1 + $0x40] sm:$0xf]
    %v40 = vld [vmem:[%s1 + $0x44] sm:$0xf]
    %v41 = vld [vmem:[%s1 + $0x48] sm:$0xf]
    %v42 = vld [vmem:[%s1 + $0x4c] sm:$0xf]
    %v43 = vld [vmem:[%s1 + $0x50] sm:$0xf]
    %v44 = vld [vmem:[%s1 + $0x54] sm:$0xf]
    %v45 = vld [vmem:[%s1 + $0x58] sm:$0xf]
    %v46 = vld [vmem:[%s1 + $0x5c] sm:$0xf]
    %v47 = vld [vmem:[%s1 + $0x60] sm:$0xf]
    %v48 = vld [vmem:[%s1 + $0x64] sm:$0xf]
    %v49 = vld [vmem:[%s1 + $0x68] sm:$0xf]
    %v50 = vld [vmem:[%s1 + $0x6c] sm:$0xf]
    %v51 = vld [vmem:[%s1 + $0x70] sm:$0xf]
    %v52 = vld [vmem:[%s1 + $0x74] sm:$0xf]
    %v53 = vld [vmem:[%s1 + $0x78] sm:$0xf]
    %v54 = vld [vmem:[%s1 + $0x7c] sm:$0xf]
    %v55 = vld [vmem:[%s2] sm:$0x1]
    %v56 = vld [vmem:[%s2 + $0x1] sm:$0x1]
    %v57 = vld [vmem:[%s0] sm:$0x3]
    %v58 = vlaneseq
    %v59 = vshrl.u32 %v58, 7
    %v60 = vsub.s32 0, %v59
    %v61 = vrot.slane %v55, %v60
    %v64 = vunpack.c.l.s4 1966171168
    %v65 = vunpack.c.0.s8 %v64
    %v66 = vlaneseq
    %v67 = vshrl.u32 %v66, 7
    %v68 = vsub.s32 %v65, %v67
    %v69 = vrot.slane %v57, %v68
    %v70 = vcombine.high %v69, %v69
    %v72 = vunpack.c.l.s4 1966171168
    %v73 = vunpack.c.0.s8 %v72
    %v74 = vlaneseq
    %v75 = vshrl.u32 %v74, 7
    %v76 = vsub.s32 %v73, %v75
    %v77 = vrot.slane %v69, %v76
    %v79 = vunpack.c.l.s4 1966171168
    %v80 = vunpack.c.0.s8 %v79
    %v81 = vlaneseq
    %v82 = vshrl.u32 %v81, 7
    %v83 = vsub.s32 %v80, %v82
    %v84 = vrot.slane %v70, %v83
    %v119 = vunpack.c.l.b16 %v23
    %v120 = vunpack.c.l.b16 %v24
    %v121 = vunpack.c.l.b16 %v25
    %v122 = vunpack.c.l.b16 %v26
    %v123 = vunpack.c.l.b16 %v27
    %v124 = vunpack.c.l.b16 %v28
    %v125 = vunpack.c.l.b16 %v29
    %v126 = vunpack.c.l.b16 %v30
    %v127 = vunpack.c.l.b16 %v31
    %v128 = vunpack.c.l.b16 %v32
    %v129 = vunpack.c.l.b16 %v33
    %v130 = vunpack.c.l.b16 %v34
    %v131 = vunpack.c.l.b16 %v35
    %v132 = vunpack.c.l.b16 %v36
    %v133 = vunpack.c.l.b16 %v37
    %v134 = vunpack.c.l.b16 %v38
    %v135 = vunpack.c.l.b16 %v39
    %v136 = vunpack.c.l.b16 %v40
    %v137 = vunpack.c.l.b16 %v41
    %v138 = vunpack.c.l.b16 %v42
    %v139 = vunpack.c.l.b16 %v43
    %v140 = vunpack.c.l.b16 %v44
    %v141 = vunpack.c.l.b16 %v45
    %v142 = vunpack.c.l.b16 %v46
    %v143 = vunpack.c.l.b16 %v47
    %v144 = vunpack.c.l.b16 %v48
    %v145 = vunpack.c.l.b16 %v49
    %v146 = vunpack.c.l.b16 %v50
    %v147 = vunpack.c.l.b16 %v51
    %v148 = vunpack.c.l.b16 %v52
    %v149 = vunpack.c.l.b16 %v53
    %v150 = vunpack.c.l.b16 %v54
    %v151 = vpack.c.b16 %v120, %v119
    %v152 = vpack.c.b16 %v122, %v121
    %v153 = vpack.c.b16 %v124, %v123
    %v154 = vpack.c.b16 %v126, %v125
    %v155 = vpack.c.b16 %v128, %v127
    %v156 = vpack.c.b16 %v130, %v129
    %v157 = vpack.c.b16 %v132, %v131
    %v158 = vpack.c.b16 %v134, %v133
    %v159 = vpack.c.b16 %v136, %v135
    %v160 = vpack.c.b16 %v138, %v137
    %v161 = vpack.c.b16 %v140, %v139
    %v162 = vpack.c.b16 %v142, %v141
    %v163 = vpack.c.b16 %v144, %v143
    %v164 = vpack.c.b16 %v146, %v145
    %v165 = vpack.c.b16 %v148, %v147
    %v166 = vpack.c.b16 %v150, %v149
    %183 = vmatprep.subr.bf16.mxu0 0
    %184 = vmatpush1.bf16.msra.mxu0 %v158
    %185 = vmatprep.subr.bf16.mxu0 0
    %186 = vmatpush1.bf16.msra.mxu0 %v157
    %187 = vmatprep.subr.bf16.mxu0 0
    %188 = vmatpush1.bf16.msra.mxu0 %v156
    %189 = vmatprep.subr.bf16.mxu0 0
    %190 = vmatpush1.bf16.msra.mxu0 %v155
    %191 = vmatprep.subr.bf16.mxu0 0
    %192 = vmatpush1.bf16.msra.mxu0 %v154
    %193 = vmatprep.subr.bf16.mxu0 0
    %194 = vmatpush1.bf16.msra.mxu0 %v153
    %195 = vmatprep.subr.bf16.mxu0 0
    %196 = vmatpush1.bf16.msra.mxu0 %v152
    %197 = vmatprep.subr.bf16.mxu0 0
    %198 = vmatpush1.bf16.msra.mxu0 %v151
    %199 = vmatprep.subr.bf16.mxu0 0
    %200 = vmatpush2.bf16.msra.mxu0 %v166
    %201 = vmatprep.subr.bf16.mxu0 0
    %202 = vmatpush2.bf16.msra.mxu0 %v165
    %203 = vmatprep.subr.bf16.mxu0 0
    %204 = vmatpush2.bf16.msra.mxu0 %v164
    %205 = vmatprep.subr.bf16.mxu0 0
    %206 = vmatpush2.bf16.msra.mxu0 %v163
    %207 = vmatprep.subr.bf16.mxu0 0
    %208 = vmatpush2.bf16.msra.mxu0 %v162
    %209 = vmatprep.subr.bf16.mxu0 0
    %210 = vmatpush2.bf16.msra.mxu0 %v161
    %211 = vmatprep.subr.bf16.mxu0 0
    %212 = vmatpush2.bf16.msra.mxu0 %v160
    %213 = vmatprep.subr.bf16.mxu0 0
    %214 = vmatpush2.bf16.msra.mxu0 %v159
    %215 = vmatprep.mubr.bf16.mxu0 %v84
    %216 = vmatmul.mubr.bf16.gmra.mxu0 %v77
    %v217 = vpop.f32.mrf.mxu0
    %v218 = vadd.f32 %v61, %v217
    %v219 = vpop.f32.mrf.mxu0
    %v220 = vpop.f32.mrf.mxu0
    %v221 = vpop.f32.mrf.mxu0
    %222 = vdwg.mxu0
    %v223 = vpack.c.bf16 %v218, %v218
    %v224 = vmul.bf16 %v223, 1056980736
    %v225 = vmul.bf16 %v223, 1027030327
    %v226 = vmul.bf16 %v225, %v223
    %v227 = vmul.bf16 %v226, %v223
    %v228 = vadd.bf16 %v223, %v227
    %v229 = vmul.bf16 %v228, 1061961548
    %v230 = vtanh.bf16.pop %v229
    %v231 = vadd.bf16 %v230, 1065369472
    %v232 = vmul.bf16 %v224, %v231
    %v233 = vunpack.c.l.bf16 %v232
    %v234 = vadd.f32 %v233, 0.0
    %s235 = scalar_lea.vmem %s0, 2
    %v236 = vld [vmem:[%s235] sm:$0x3]
    %v239 = vunpack.c.l.s4 1966171168
    %v240 = vunpack.c.0.s8 %v239
    %v241 = vlaneseq
    %v242 = vshrl.u32 %v241, 7
    %v243 = vsub.s32 %v240, %v242
    %v244 = vrot.slane %v236, %v243
    %v245 = vcombine.high %v244, %v244
    %v247 = vunpack.c.l.s4 1966171168
    %v248 = vunpack.c.0.s8 %v247
    %v249 = vlaneseq
    %v250 = vshrl.u32 %v249, 7
    %v251 = vsub.s32 %v248, %v250
    %v252 = vrot.slane %v244, %v251
    %v254 = vunpack.c.l.s4 1966171168
    %v255 = vunpack.c.0.s8 %v254
    %v256 = vlaneseq
    %v257 = vshrl.u32 %v256, 7
    %v258 = vsub.s32 %v255, %v257
    %v259 = vrot.slane %v245, %v258
    %262 = vmatprep.subr.bf16.mxu0 0
    %263 = vmatpush1.bf16.msra.mxu0 %v158
    %264 = vmatprep.subr.bf16.mxu0 0
    %265 = vmatpush1.bf16.msra.mxu0 %v157
    %266 = vmatprep.subr.bf16.mxu0 0
    %267 = vmatpush1.bf16.msra.mxu0 %v156
    %268 = vmatprep.subr.bf16.mxu0 0
    %269 = vmatpush1.bf16.msra.mxu0 %v155
    %270 = vmatprep.subr.bf16.mxu0 0
    %271 = vmatpush1.bf16.msra.mxu0 %v154
    %272 = vmatprep.subr.bf16.mxu0 0
    %273 = vmatpush1.bf16.msra.mxu0 %v153
    %274 = vmatprep.subr.bf16.mxu0 0
    %275 = vmatpush1.bf16.msra.mxu0 %v152
    %276 = vmatprep.subr.bf16.mxu0 0
    %277 = vmatpush1.bf16.msra.mxu0 %v151
    %278 = vmatprep.subr.bf16.mxu0 0
    %279 = vmatpush2.bf16.msra.mxu0 %v166
    %280 = vmatprep.subr.bf16.mxu0 0
    %281 = vmatpush2.bf16.msra.mxu0 %v165
    %282 = vmatprep.subr.bf16.mxu0 0
    %283 = vmatpush2.bf16.msra.mxu0 %v164
    %284 = vmatprep.subr.bf16.mxu0 0
    %285 = vmatpush2.bf16.msra.mxu0 %v163
    %286 = vmatprep.subr.bf16.mxu0 0
    %287 = vmatpush2.bf16.msra.mxu0 %v162
    %288 = vmatprep.subr.bf16.mxu0 0
    %289 = vmatpush2.bf16.msra.mxu0 %v161
    %290 = vmatprep.subr.bf16.mxu0 0
    %291 = vmatpush2.bf16.msra.mxu0 %v160
    %292 = vmatprep.subr.bf16.mxu0 0
    %293 = vmatpush2.bf16.msra.mxu0 %v159
    %294 = vmatprep.mubr.bf16.mxu0 %v259
    %295 = vmatmul.mubr.bf16.gmra.mxu0 %v252
    %v296 = vpop.f32.mrf.mxu0
    %v297 = vadd.f32 %v61, %v296
    %v298 = vpop.f32.mrf.mxu0
    %v299 = vpop.f32.mrf.mxu0
    %v300 = vpop.f32.mrf.mxu0
    %301 = vdwg.mxu0
    %v302 = vpack.c.bf16 %v297, %v297
    %v303 = vmul.bf16 %v302, 1056980736
    %v304 = vmul.bf16 %v302, 1027030327
    %v305 = vmul.bf16 %v304, %v302
    %v306 = vmul.bf16 %v305, %v302
    %v307 = vadd.bf16 %v302, %v306
    %v308 = vmul.bf16 %v307, 1061961548
    %v309 = vtanh.bf16.pop %v308
    %v310 = vadd.bf16 %v309, 1065369472
    %v311 = vmul.bf16 %v303, %v310
    %v312 = vunpack.c.l.bf16 %v311
    %v313 = vadd.f32 %v234, %v312
    %s314 = scalar_lea.vmem %s0, 4
    %v315 = vld [vmem:[%s314] sm:$0x3]
    %v318 = vunpack.c.l.s4 1966171168
    %v319 = vunpack.c.0.s8 %v318
    %v320 = vlaneseq
    %v321 = vshrl.u32 %v320, 7
    %v322 = vsub.s32 %v319, %v321
    %v323 = vrot.slane %v315, %v322
    %v324 = vcombine.high %v323, %v323
    %v326 = vunpack.c.l.s4 1966171168
    %v327 = vunpack.c.0.s8 %v326
    %v328 = vlaneseq
    %v329 = vshrl.u32 %v328, 7
    %v330 = vsub.s32 %v327, %v329
    %v331 = vrot.slane %v323, %v330
    %v333 = vunpack.c.l.s4 1966171168
    %v334 = vunpack.c.0.s8 %v333
    %v335 = vlaneseq
    %v336 = vshrl.u32 %v335, 7
    %v337 = vsub.s32 %v334, %v336
    %v338 = vrot.slane %v324, %v337
    %341 = vmatprep.subr.bf16.mxu0 0
    %342 = vmatpush1.bf16.msra.mxu0 %v158
    %343 = vmatprep.subr.bf16.mxu0 0
    %344 = vmatpush1.bf16.msra.mxu0 %v157
    %345 = vmatprep.subr.bf16.mxu0 0
    %346 = vmatpush1.bf16.msra.mxu0 %v156
    %347 = vmatprep.subr.bf16.mxu0 0
    %348 = vmatpush1.bf16.msra.mxu0 %v155
    %349 = vmatprep.subr.bf16.mxu0 0
    %350 = vmatpush1.bf16.msra.mxu0 %v154
    %351 = vmatprep.subr.bf16.mxu0 0
    %352 = vmatpush1.bf16.msra.mxu0 %v153
    %353 = vmatprep.subr.bf16.mxu0 0
    %354 = vmatpush1.bf16.msra.mxu0 %v152
    %355 = vmatprep.subr.bf16.mxu0 0
    %356 = vmatpush1.bf16.msra.mxu0 %v151
    %357 = vmatprep.subr.bf16.mxu0 0
    %358 = vmatpush2.bf16.msra.mxu0 %v166
    %359 = vmatprep.subr.bf16.mxu0 0
    %360 = vmatpush2.bf16.msra.mxu0 %v165
    %361 = vmatprep.subr.bf16.mxu0 0
    %362 = vmatpush2.bf16.msra.mxu0 %v164
    %363 = vmatprep.subr.bf16.mxu0 0
    %364 = vmatpush2.bf16.msra.mxu0 %v163
    %365 = vmatprep.subr.bf16.mxu0 0
    %366 = vmatpush2.bf16.msra.mxu0 %v162
    %367 = vmatprep.subr.bf16.mxu0 0
    %368 = vmatpush2.bf16.msra.mxu0 %v161
    %369 = vmatprep.subr.bf16.mxu0 0
    %370 = vmatpush2.bf16.msra.mxu0 %v160
    %371 = vmatprep.subr.bf16.mxu0 0
    %372 = vmatpush2.bf16.msra.mxu0 %v159
    %373 = vmatprep.mubr.bf16.mxu0 %v338
    %374 = vmatmul.mubr.bf16.gmra.mxu0 %v331
    %v375 = vpop.f32.mrf.mxu0
    %v376 = vadd.f32 %v61, %v375
    %v377 = vpop.f32.mrf.mxu0
    %v378 = vpop.f32.mrf.mxu0
    %v379 = vpop.f32.mrf.mxu0
    %380 = vdwg.mxu0
    %v381 = vpack.c.bf16 %v376, %v376
    %v382 = vmul.bf16 %v381, 1056980736
    %v383 = vmul.bf16 %v381, 1027030327
    %v384 = vmul.bf16 %v383, %v381
    %v385 = vmul.bf16 %v384, %v381
    %v386 = vadd.bf16 %v381, %v385
    %v387 = vmul.bf16 %v386, 1061961548
    %v388 = vtanh.bf16.pop %v387
    %v389 = vadd.bf16 %v388, 1065369472
    %v390 = vmul.bf16 %v382, %v389
    %v391 = vunpack.c.l.bf16 %v390
    %v392 = vadd.f32 %v313, %v391
    %s393 = scalar_lea.vmem %s0, 6
    %v394 = vld [vmem:[%s393] sm:$0x3]
    %v397 = vunpack.c.l.s4 1966171168
    %v398 = vunpack.c.0.s8 %v397
    %v399 = vlaneseq
    %v400 = vshrl.u32 %v399, 7
    %v401 = vsub.s32 %v398, %v400
    %v402 = vrot.slane %v394, %v401
    %v403 = vcombine.high %v402, %v402
    %v405 = vunpack.c.l.s4 1966171168
    %v406 = vunpack.c.0.s8 %v405
    %v407 = vlaneseq
    %v408 = vshrl.u32 %v407, 7
    %v409 = vsub.s32 %v406, %v408
    %v410 = vrot.slane %v402, %v409
    %v412 = vunpack.c.l.s4 1966171168
    %v413 = vunpack.c.0.s8 %v412
    %v414 = vlaneseq
    %v415 = vshrl.u32 %v414, 7
    %v416 = vsub.s32 %v413, %v415
    %v417 = vrot.slane %v403, %v416
    %420 = vmatprep.subr.bf16.mxu0 0
    %421 = vmatpush1.bf16.msra.mxu0 %v158
    %422 = vmatprep.subr.bf16.mxu0 0
    %423 = vmatpush1.bf16.msra.mxu0 %v157
    %424 = vmatprep.subr.bf16.mxu0 0
    %425 = vmatpush1.bf16.msra.mxu0 %v156
    %426 = vmatprep.subr.bf16.mxu0 0
    %427 = vmatpush1.bf16.msra.mxu0 %v155
    %428 = vmatprep.subr.bf16.mxu0 0
    %429 = vmatpush1.bf16.msra.mxu0 %v154
    %430 = vmatprep.subr.bf16.mxu0 0
    %431 = vmatpush1.bf16.msra.mxu0 %v153
    %432 = vmatprep.subr.bf16.mxu0 0
    %433 = vmatpush1.bf16.msra.mxu0 %v152
    %434 = vmatprep.subr.bf16.mxu0 0
    %435 = vmatpush1.bf16.msra.mxu0 %v151
    %436 = vmatprep.subr.bf16.mxu0 0
    %437 = vmatpush2.bf16.msra.mxu0 %v166
    %438 = vmatprep.subr.bf16.mxu0 0
    %439 = vmatpush2.bf16.msra.mxu0 %v165
    %440 = vmatprep.subr.bf16.mxu0 0
    %441 = vmatpush2.bf16.msra.mxu0 %v164
    %442 = vmatprep.subr.bf16.mxu0 0
    %443 = vmatpush2.bf16.msra.mxu0 %v163
    %444 = vmatprep.subr.bf16.mxu0 0
    %445 = vmatpush2.bf16.msra.mxu0 %v162
    %446 = vmatprep.subr.bf16.mxu0 0
    %447 = vmatpush2.bf16.msra.mxu0 %v161
    %448 = vmatprep.subr.bf16.mxu0 0
    %449 = vmatpush2.bf16.msra.mxu0 %v160
    %450 = vmatprep.subr.bf16.mxu0 0
    %451 = vmatpush2.bf16.msra.mxu0 %v159
    %452 = vmatprep.mubr.bf16.mxu0 %v417
    %453 = vmatmul.mubr.bf16.gmra.mxu0 %v410
    %v454 = vpop.f32.mrf.mxu0
    %v455 = vadd.f32 %v61, %v454
    %v456 = vpop.f32.mrf.mxu0
    %v457 = vpop.f32.mrf.mxu0
    %v458 = vpop.f32.mrf.mxu0
    %459 = vdwg.mxu0
    %v460 = vpack.c.bf16 %v455, %v455
    %v461 = vmul.bf16 %v460, 1056980736
    %v462 = vmul.bf16 %v460, 1027030327
    %v463 = vmul.bf16 %v462, %v460
    %v464 = vmul.bf16 %v463, %v460
    %v465 = vadd.bf16 %v460, %v464
    %v466 = vmul.bf16 %v465, 1061961548
    %v467 = vtanh.bf16.pop %v466
    %v468 = vadd.bf16 %v467, 1065369472
    %v469 = vmul.bf16 %v461, %v468
    %v470 = vunpack.c.l.bf16 %v469
    %v471 = vadd.f32 %v392, %v470
    %v472 = vmul.f32 %v471, 0.25
    %v473 = vpack.c.bf16 %v472, %v472
    %v474 = vld [vmem:[%s3] sm:$0xf]
    %v475 = vld [vmem:[%s3 + $0x4] sm:$0xf]
    %v476 = vld [vmem:[%s3 + $0x8] sm:$0xf]
    %v477 = vld [vmem:[%s3 + $0xc] sm:$0xf]
    %v478 = vld [vmem:[%s3 + $0x10] sm:$0xf]
    %v479 = vld [vmem:[%s3 + $0x14] sm:$0xf]
    %v480 = vld [vmem:[%s3 + $0x18] sm:$0xf]
    %v481 = vld [vmem:[%s3 + $0x1c] sm:$0xf]
    %v482 = vld [vmem:[%s3 + $0x20] sm:$0xf]
    %v483 = vld [vmem:[%s3 + $0x24] sm:$0xf]
    %v484 = vld [vmem:[%s3 + $0x28] sm:$0xf]
    %v485 = vld [vmem:[%s3 + $0x2c] sm:$0xf]
    %v486 = vld [vmem:[%s3 + $0x30] sm:$0xf]
    %v487 = vld [vmem:[%s3 + $0x34] sm:$0xf]
    %v488 = vld [vmem:[%s3 + $0x38] sm:$0xf]
    %v489 = vld [vmem:[%s3 + $0x3c] sm:$0xf]
    %v490 = vlaneseq
    %v491 = vshrl.u32 %v490, 7
    %v492 = vsub.s32 0, %v491
    %v493 = vrot.slane %v56, %v492
    %v510 = vunpack.c.l.b16 %v474
    %v511 = vunpack.c.l.b16 %v475
    %v512 = vunpack.c.l.b16 %v476
    %v513 = vunpack.c.l.b16 %v477
    %v514 = vunpack.c.l.b16 %v478
    %v515 = vunpack.c.l.b16 %v479
    %v516 = vunpack.c.l.b16 %v480
    %v517 = vunpack.c.l.b16 %v481
    %v518 = vunpack.c.l.b16 %v482
    %v519 = vunpack.c.l.b16 %v483
    %v520 = vunpack.c.l.b16 %v484
    %v521 = vunpack.c.l.b16 %v485
    %v522 = vunpack.c.l.b16 %v486
    %v523 = vunpack.c.l.b16 %v487
    %v524 = vunpack.c.l.b16 %v488
    %v525 = vunpack.c.l.b16 %v489
    %v526 = vpack.c.b16 %v511, %v510
    %v527 = vpack.c.b16 %v513, %v512
    %v528 = vpack.c.b16 %v515, %v514
    %v529 = vpack.c.b16 %v517, %v516
    %v530 = vpack.c.b16 %v519, %v518
    %v531 = vpack.c.b16 %v521, %v520
    %v532 = vpack.c.b16 %v523, %v522
    %v533 = vpack.c.b16 %v525, %v524
    %542 = vmatprep.subr.bf16.mxu0 0
    %543 = vmatpush1.bf16.msra.mxu0 %v533
    %544 = vmatprep.subr.bf16.mxu0 0
    %545 = vmatpush1.bf16.msra.mxu0 %v532
    %546 = vmatprep.subr.bf16.mxu0 0
    %547 = vmatpush1.bf16.msra.mxu0 %v531
    %548 = vmatprep.subr.bf16.mxu0 0
    %549 = vmatpush1.bf16.msra.mxu0 %v530
    %550 = vmatprep.subr.bf16.mxu0 0
    %551 = vmatpush1.bf16.msra.mxu0 %v529
    %552 = vmatprep.subr.bf16.mxu0 0
    %553 = vmatpush1.bf16.msra.mxu0 %v528
    %554 = vmatprep.subr.bf16.mxu0 0
    %555 = vmatpush1.bf16.msra.mxu0 %v527
    %556 = vmatprep.subr.bf16.mxu0 0
    %557 = vmatpush1.bf16.msra.mxu0 %v526
    %558 = vmatprep.subr.bf16.mxu0 0
    %559 = vmatpush2.bf16.msra.mxu0 0
    %560 = vmatprep.subr.bf16.mxu0 0
    %561 = vmatpush2.bf16.msra.mxu0 0
    %562 = vmatprep.subr.bf16.mxu0 0
    %563 = vmatpush2.bf16.msra.mxu0 0
    %564 = vmatprep.subr.bf16.mxu0 0
    %565 = vmatpush2.bf16.msra.mxu0 0
    %566 = vmatprep.subr.bf16.mxu0 0
    %567 = vmatpush2.bf16.msra.mxu0 0
    %568 = vmatprep.subr.bf16.mxu0 0
    %569 = vmatpush2.bf16.msra.mxu0 0
    %570 = vmatprep.subr.bf16.mxu0 0
    %571 = vmatpush2.bf16.msra.mxu0 0
    %572 = vmatprep.subr.bf16.mxu0 0
    %573 = vmatpush2.bf16.msra.mxu0 0
    %574 = vmatprep.mubr.bf16.mxu0 0
    %575 = vmatmul.mubr.bf16.gmra.mxu0 %v473
    %v576 = vpop.f32.mrf.mxu0
    %v577 = vadd.f32 %v493, %v576
    %v578 = vpop.f32.mrf.mxu0
    %v579 = vpop.f32.mrf.mxu0
    %v580 = vpop.f32.mrf.mxu0
    %581 = vdwg.mxu0
    %582 = vst [vmem:[#allocation2] sm:$0x3] %v577
    // Predicated region
    $region18: #{classifier_logits_pallas.1} parent=1 // pred_check
      _
    $region19: #{classifier_logits_pallas.1} parent=1 // pred_check_branch
      %584 = sbr.rel (0) target = $region21
    $region20: #{classifier_logits_pallas.1} parent=1 // pred_region
      %s586 = ssub.s32 32, 32
      %587 = vsyncadd [#allocation3], %s586
      %s589 = sshll.u32 [#allocation2], 4
      %s590 = int_to_ptr.vmem [resolvable:$true] %s589
      %592 = dma.vmem_to_hbm [thread:$0]  %s590, 32, %s4, [#allocation3]
    $region21: #{classifier_logits_pallas.1} parent=1 // pred_fallthru
      _
    // Predicated region
    $region22: #{classifier_logits_pallas.1} parent=1 // pred_check
      _
    $region23: #{classifier_logits_pallas.1} parent=1 // pred_check_branch
      %594 = sbr.rel (0) target = $region25
    $region24: #{classifier_logits_pallas.1} parent=1 // pred_region
      %595 = dma.done [#allocation3], 32
    $region25: #{classifier_logits_pallas.1} parent=1 // pred_fallthru
      _
    %596 = vsyncpa [#allocation3], 1

</llo_original>
